<compile_context>
chip_gen: v7x
topology: tpu7x:2x2x1
jax: 0.10.0
libtpu: 0.0.40
codegen_flags: <defaults>
</compile_context>

<pallas_src>
import functools

import jax
import jax.numpy as jnp
from jax.experimental import pallas as pl
from jax.experimental.pallas import tpu as pltpu


def _up2_kernel_full(x_ref, e_ref, o_ref):
    # x_ref: (TR, g*W); e_ref: (g*W, 4*g*W) block-diagonal interleave+duplicate
    # o_ref: (TR, 4*g*W) final-layout output rows
    acc = jnp.dot(x_ref[...], e_ref[...], preferred_element_type=jnp.float32)
    o_ref[...] = acc.astype(o_ref.dtype)


def _up2_kernel_halved(x_ref, e_ref, o_ref, *, half):
    # x_ref: (TR, W); e_ref: (W, 2W) lane-interleave matrix; o_ref: (TR, 4W)
    acc = jnp.dot(x_ref[...], e_ref[...], preferred_element_type=jnp.float32)
    acc = acc.astype(o_ref.dtype)
    o_ref[:, :half] = acc   # output image row 2i
    o_ref[:, half:] = acc   # output image row 2i+1 (identical: nearest neighbor)


def up_conv_drunet_forward(x):
    """Nearest-neighbor 2x spatial upsample of an NCHW tensor via Pallas."""
    assert jnp.issubdtype(x.dtype, jnp.floating), (
        "up_conv_drunet_forward: floating dtypes only (0/1-matrix MXU path)")
    N, C, H, W = x.shape
    itemsize = jnp.dtype(x.dtype).itemsize
    PH = N * C * H

    # Fold g input rows per kernel row when 4W < 128 so the output block is
    # lane-dense (>= 128 lanes).  Fall back to g=1 if PH isn't divisible.
    g = 1
    if 4 * W < 128:
        g_cand = -(-128 // (4 * W))          # ceil(128 / 4W)
        if PH % g_cand == 0:
            g = g_cand
    KW = g * W                               # kernel-row input width
    OW = 4 * g * W                           # kernel-row output width
    R = PH // g                              # number of kernel rows

    # Halved expansion only valid for g == 1; require aligned 2W half-stores.
    halved = (g == 1) and ((2 * W) % 128 == 0)
    EW = 2 * W if halved else OW             # expansion-matrix width

    # Constant 0/1 expansion matrix.
    if halved:
        c = jnp.arange(EW)
        j = jnp.arange(W)
        e = ((c[None, :] // 2) == j[:, None]).astype(x.dtype)
    else:
        r = jnp.arange(KW)
        c = jnp.arange(OW)
        p_r, j_r = r // W, r % W
        p_c = c // (4 * W)
        j_c = (c % (2 * W)) // 2
        e = ((p_c[None, :] == p_r[:, None])
             & (j_c[None, :] == j_r[:, None])).astype(x.dtype)

    # ---- tile sizing -------------------------------------------------------
    sub = {4: 8, 2: 16, 1: 32}.get(itemsize, 8)   # sublane packing per dtype
    MIN_STEPS = 8                                  # >= 4 steps per v7x TC
    BUDGET = 24 * 1024 * 1024                      # headroom under 32 MiB scoped

    if R <= sub:
        tr = R                                     # single block == full dim
    else:
        e_bytes = KW * EW * itemsize               # constant, double-buffered
        # per-row: 2x input buf + 2x output buf + astype temp + f32 accumulator
        bytes_per_row = (2 * KW + 3 * OW) * itemsize + EW * 4
        avail = max(sub * bytes_per_row, BUDGET - 2 * e_bytes)
        tr = avail // bytes_per_row
        # cap per-buffer output tile (~4 MiB): big tiles buy nothing past knee
        tr = min(tr, max(sub, (4 * 1024 * 1024) // (OW * itemsize)))
        # enforce >= MIN_STEPS grid steps (or as many as the row count allows)
        tr = min(tr, max(sub, R // MIN_STEPS))
        tr = max(sub, (tr // sub) * sub)

    grid = (pl.cdiv(R, tr),)

    kernel = (functools.partial(_up2_kernel_halved, half=EW) if halved
              else _up2_kernel_full)

    x2 = x.reshape(R, KW)                          # free contiguous reshape

    out2 = pl.pallas_call(
        kernel,
        out_shape=jax.ShapeDtypeStruct((R, OW), x.dtype),
        grid=grid,
        in_specs=[
            pl.BlockSpec((tr, KW), lambda i: (i, 0)),
            pl.BlockSpec((KW, EW), lambda i: (0, 0)),   # constant block
        ],
        out_specs=pl.BlockSpec((tr, OW), lambda i: (i, 0)),
        compiler_params=pltpu.CompilerParams(
            dimension_semantics=("parallel",),
            vmem_limit_bytes=32 * 1024 * 1024,
        ),
    )(x2, e)

    # Free contiguous reshape back to NCHW.
    return out2.reshape(N, C, 2 * H, 2 * W)


if __name__ == "__main__":
    key = jax.random.PRNGKey(0)

    # Small-W case (exercises the folded block-diagonal path, g=2).
    N, C, H, W = 2, 4, 16, 16
    x = jax.random.normal(key, (N, C, H, W), dtype=jnp.float32)
    y = jax.block_until_ready(up_conv_drunet_forward(x))
    y_ref = jnp.repeat(jnp.repeat(x, 2, axis=2), 2, axis=3)
    assert y.shape == (N, C, 2 * H, 2 * W), y.shape
    assert jnp.allclose(y, y_ref), "mismatch vs nearest-neighbor reference (g=2 path)"

    # Wide case (exercises the halved-expansion path, g=1).
    x2 = jax.random.normal(jax.random.PRNGKey(1), (1, 2, 8, 64), dtype=jnp.float32)
    y2 = jax.block_until_ready(up_conv_drunet_forward(x2))
    y2_ref = jnp.repeat(jnp.repeat(x2, 2, axis=2), 2, axis=3)
    assert y2.shape == (1, 2, 16, 128), y2.shape
    assert jnp.allclose(y2, y2_ref), "mismatch vs nearest-neighbor reference (halved path)"

    print("KERNEL_OK")
</pallas_src>

<mosaic_0001>
module attributes {stable_mosaic.version = 11 : i64} {
  func.func @_up2_kernel_full(%arg0: i32, %arg1: memref<8x32xf32, #tpu.memory_space<vmem>>, %arg2: memref<32x128xf32, #tpu.memory_space<vmem>>, %arg3: memref<8x128xf32, #tpu.memory_space<vmem>>) attributes {dimension_semantics = [#tpu.dimension_semantics<parallel>], iteration_bounds = array<i64: 8>, scalar_prefetch = 0 : i64, scratch_operands = 0 : i64, tpu.core_type = #tpu.core_type<tc>, window_params = [{transform_indices = @transform_0, window_bounds = array<i64: 8, 32>}, {pipeline_mode = #tpu.pipeline_mode<synchronous>, transform_indices = @transform_1, window_bounds = array<i64: 32, 128>}, {transform_indices = @transform_2, window_bounds = array<i64: 8, 128>}]} {
    %c0 = arith.constant 0 : index
    %c0_0 = arith.constant 0 : index
    %0 = vector.load %arg1[%c0, %c0_0] : memref<8x32xf32, #tpu.memory_space<vmem>>, vector<8x32xf32>
    %c0_1 = arith.constant 0 : index
    %c0_2 = arith.constant 0 : index
    %1 = vector.load %arg2[%c0_1, %c0_2] : memref<32x128xf32, #tpu.memory_space<vmem>>, vector<32x128xf32>
    %cst = arith.constant dense<0.000000e+00> : vector<8x128xf32>
    %2 = tpu.matmul %0, %1, %cst {dimension_numbers = #tpu.dot_dimension_numbers<[1], [0], [0], [1], [0, 0, 1, 1], [], []>} : vector<8x32xf32>, vector<32x128xf32>, vector<8x128xf32> -> vector<8x128xf32>
    %c0_3 = arith.constant 0 : index
    %c0_4 = arith.constant 0 : index
    %3 = vector.load %arg3[%c0_3, %c0_4] : memref<8x128xf32, #tpu.memory_space<vmem>>, vector<8x128xf32>
    tpu.vector_store %arg3[%c0_3, %c0_4], %2 {strides = array<i32>} : memref<8x128xf32, #tpu.memory_space<vmem>>, vector<8x128xf32>,
    return
  }
  func.func @transform_0(%arg0: i32) -> (i32, i32) {
    %c0_i32 = arith.constant 0 : i32
    %c0_i32_0 = arith.constant 0 : i32
    return %arg0, %c0_i32 : i32, i32
  }
  func.func @transform_1(%arg0: i32) -> (i32, i32) {
    %c0_i32 = arith.constant 0 : i32
    %c0_i32_0 = arith.constant 0 : i32
    %c0_i32_1 = arith.constant 0 : i32
    return %c0_i32, %c0_i32_0 : i32, i32
  }
  func.func @transform_2(%arg0: i32) -> (i32, i32) {
    %c0_i32 = arith.constant 0 : i32
    %c0_i32_0 = arith.constant 0 : i32
    return %arg0, %c0_i32 : i32, i32
  }
}

</mosaic_0001>

<llo_original>
// kernel: tpu_custom_call.1
$region0: #{tpu_custom_call.1}
  #allocation0 [shape = 'u32[]', space=smem, size = 0x4, offset = 0x4, fixed_abs, tag = 'smem constant byte address 0x4 - core index']
  #allocation1 [shape = 'u32[144,128]{1,0:T(1,128)}', space=vmem, size = 0x12000, scoped, tag = 'internal scratch']
  %s0 = inlined_call_operand.vmem [shape: f32[64,32], index: 0, kind: input, shape index: {}]
  %s1 = inlined_call_operand.vmem [shape: f32[32,128], index: 1, kind: input, shape index: {}]
  %s2 = inlined_call_operand.hbm [shape: f32[64,128], index: 2, kind: output, shape index: {}]
  %s3 = sld [smem:[#allocation0]]
  $region41: #{tpu_custom_call.1} parent=0
    _
  %s5 = ssub.s32 1, %s3
  %s6 = scalar_select 0, %s5, %s3
  $region1: #{tpu_custom_call.1} parent=0
    #allocation2 [shape = 'u8[8192]{0}', space=vmem, size = 0x2000, scoped, tag = 'output window, operand 0']
    #allocation3 [shape = 's32[2]{0}', space=sflag, size = 0x8, scoped, tag = 'scoped memory for tpu_custom_call.1']
    %7 = vsyncpa [#allocation3], 0
    %s8 = scalar_lea.sflag [#allocation3], 1
    %9 = vsyncpa %s8, 0
    loop: start=0, step=1, limit=10
    $region2: #{tpu_custom_call.1} parent=1 // loop_pre_header
      _
    $region3: #{tpu_custom_call.1} parent=1 // loop_header
      %s11 = sphi 0, %s15
      %p12 = scmp.ge.s32.totalorder %s11, 10
      %s21 = sphi 0, %s23
      %s24 = sphi 0, %s21
      %s25 = sphi 0, %s24
      %s41 = sphi 0, %s25
      %s45 = sphi 0, %s45
      %s47 = sphi 0, %s45
      %s48 = sphi 0, %s47
      %s62 = sphi 0, %s48
      %s68 = sphi 0, %s70
      %s71 = sphi 0, %s68
      %s72 = sphi 0, %s71
      %s88 = sphi 0, %s72
    $region4: #{tpu_custom_call.1} parent=1 // loop_header_branch
      %14 = sbr.rel (%p12) target = $region8
    $region5: #{tpu_custom_call.1} parent=1 // loop_body
      %s16 = ssub.s32 %s11, 1
      %s17 = ssub.s32 %s11, 2
      %s18 = sadd.s32 %s11, 1
      %s19 = ssub.s32 %s11, %s18
      %p20 = scmp.eq.s32.totalorder %s19, 0
      %s22 = sadd.s32 %s21, 1
      %s23 = scalar_select %p20, %s21, %s22
      %p26 = pneg %p20
      %p27 = scmp.eq.s32.totalorder %s11, 7
      %p28 = por %p26, %p27
      %p29 = scmp.ne.s32.totalorder %s21, %s24
      %p30 = scmp.eq.s32.totalorder %s11, 0
      %p31 = por %p29, %p30
      %p32 = scmp.ne.s32.totalorder %s21, %s24
      %p33 = scmp.eq.s32.totalorder %s16, 7
      %p34 = por %p32, %p33
      %p35 = scmp.ne.s32.totalorder %s24, %s25
      %p36 = scmp.eq.s32.totalorder %s16, 0
      %p37 = por %p35, %p36
      %p38 = scmp.ne.s32.totalorder %s24, %s25
      %p39 = scmp.eq.s32.totalorder %s17, 7
      %p40 = por %p38, %p39
      %p42 = scmp.ne.s32.totalorder %s25, %s41
      %p43 = scmp.eq.s32.totalorder %s17, 0
      %p44 = por %p42, %p43
      %s46 = sadd.s32 %s45, 1
      %p49 = scmp.eq.s32.totalorder %s11, 7
      %p50 = scmp.ne.s32.totalorder %s45, %s47
      %p51 = scmp.eq.s32.totalorder %s11, 0
      %p52 = por %p50, %p51
      %p53 = scmp.ne.s32.totalorder %s45, %s47
      %p54 = scmp.eq.s32.totalorder %s16, 7
      %p55 = por %p53, %p54
      %p56 = scmp.ne.s32.totalorder %s47, %s48
      %p57 = scmp.eq.s32.totalorder %s16, 0
      %p58 = por %p56, %p57
      %p59 = scmp.ne.s32.totalorder %s47, %s48
      %p60 = scmp.eq.s32.totalorder %s17, 7
      %p61 = por %p59, %p60
      %p63 = scmp.ne.s32.totalorder %s48, %s62
      %p64 = scmp.eq.s32.totalorder %s17, 0
      %p65 = por %p63, %p64
      %s66 = ssub.s32 %s11, %s18
      %p67 = scmp.eq.s32.totalorder %s66, 0
      %s69 = sadd.s32 %s68, 1
      %s70 = scalar_select %p67, %s68, %s69
      %p73 = pneg %p67
      %p74 = scmp.eq.s32.totalorder %s11, 7
      %p75 = por %p73, %p74
      %p76 = scmp.ne.s32.totalorder %s68, %s71
      %p77 = scmp.eq.s32.totalorder %s11, 0
      %p78 = por %p76, %p77
      %p79 = scmp.ne.s32.totalorder %s68, %s71
      %p80 = scmp.eq.s32.totalorder %s16, 7
      %p81 = por %p79, %p80
      %p82 = scmp.ne.s32.totalorder %s71, %s72
      %p83 = scmp.eq.s32.totalorder %s16, 0
      %p84 = por %p82, %p83
      %p85 = scmp.ne.s32.totalorder %s71, %s72
      %p86 = scmp.eq.s32.totalorder %s17, 7
      %p87 = por %p85, %p86
      %p89 = scmp.ne.s32.totalorder %s72, %s88
      %p90 = scmp.eq.s32.totalorder %s17, 0
      %p91 = por %p89, %p90
      %p92 = scmp.le.s32.totalorder 1, %s11
      %p93 = scmp.lt.s32.totalorder %s11, 9
      %p94 = pnand %p92, %p93
      %p95 = pneg %p94
      // Predicated region
      $region9: #{tpu_custom_call.1} parent=5 // pred_check
        _
      $region10: #{tpu_custom_call.1} parent=5 // pred_check_branch
        %97 = sbr.rel (%p94) target = $region12
      $region11: #{tpu_custom_call.1} parent=5 // pred_region
        %s98 = ssub.s32 %s11, 1
        // Predicated region
        $region13: #{tpu_custom_call.1} parent=11 // pred_check
          %p99 = pneg %p58
        $region14: #{tpu_custom_call.1} parent=11 // pred_check_branch
          %101 = sbr.rel (%p99) target = $region16
        $region15: #{tpu_custom_call.1} parent=11 // pred_region
          _
        $region16: #{tpu_custom_call.1} parent=11 // pred_fallthru
          _
      $region12: #{tpu_custom_call.1} parent=5 // pred_fallthru
        _
      %p102 = scmp.lt.s32.totalorder %s11, 8
      // Predicated region
      $region17: #{tpu_custom_call.1} parent=5 // pred_check
        %p103 = pneg %p102
      $region18: #{tpu_custom_call.1} parent=5 // pred_check_branch
        %105 = sbr.rel (%p103) target = $region20
      $region19: #{tpu_custom_call.1} parent=5 // pred_region
        // Predicated region
        $region21: #{tpu_custom_call.1} parent=19 // pred_check
          %p106 = pneg %p31
        $region22: #{tpu_custom_call.1} parent=19 // pred_check_branch
          %108 = sbr.rel (%p106) target = $region24
        $region23: #{tpu_custom_call.1} parent=19 // pred_region
          %p109 = scmp.lt.s32.totalorder %s11, 7
          %s110 = scalar_select %p109, %s11, 7
          %s111 = smul.addr %s110, 8
          %s112 = scalar_lea.vmem %s0, %s111
        $region24: #{tpu_custom_call.1} parent=19 // pred_fallthru
          _
      $region20: #{tpu_custom_call.1} parent=5 // pred_fallthru
        _
      %p113 = scmp.le.s32.totalorder 1, %s11
      %p114 = scmp.lt.s32.totalorder %s11, 9
      %p115 = pnand %p113, %p114
      %p116 = pneg %p115
      // Predicated region
      $region25: #{tpu_custom_call.1} parent=5 // pred_check
        _
      $region26: #{tpu_custom_call.1} parent=5 // pred_check_branch
        %118 = sbr.rel (%p115) target = $region28
      $region27: #{tpu_custom_call.1} parent=5 // pred_region
        %s119 = ssub.s32 %s11, 1
        %p120 = scmp.lt.s32.totalorder %s16, 7
        %s121 = scalar_select %p120, %s16, 7
        %s122 = smul.addr %s121, 8
        %s123 = scalar_lea.vmem %s0, %s122
        %p124 = pneg %p37
        %p125 = pneg %p34
        %p126 = pneg %p58
        %p127 = pneg %p55
        %p128 = pneg %p84
        %p129 = pneg %p81
        %s130 = sand.u32 %s71, 1
        %s131 = scalar_lea.sflag [#allocation3], %s130
        %s132 = sand.u32 %s71, 1
        %s133 = smul.addr %s132, 8
        %s134 = scalar_lea.vmem [#allocation2], %s133
        %p135 = scmp.lt.s32.totalorder %s16, 7
        %s136 = scalar_select %p135, %s16, 7
        %s137 = smul.addr %s136, 8
        %s138 = scalar_lea.vmem %s0, %s137
        %v139 = vld [vmem:[%s138] sm:$0xff]
        %v140 = vld [vmem:[%s1] sm:$0xff]
        %v141 = vld [vmem:[%s1 + $0x8] sm:$0xff]
        %v142 = vld [vmem:[%s1 + $0x10] sm:$0xff]
        %v143 = vld [vmem:[%s1 + $0x18] sm:$0xff]
        %vm144 = vcmask 261120
        %v146 = vsel %vm144, %v139, 0
        %148 = vmatprep.subr.mxu0 0.0
        %149 = vmatpush1.msra.mxu0 %v140
        %150 = vmatprep.subr.mxu0 0.0
        %151 = vmatpush1.msra.mxu0 %v141
        %152 = vmatprep.subr.mxu0 0.0
        %153 = vmatpush1.msra.mxu0 %v142
        %154 = vmatprep.subr.mxu0 0.0
        %155 = vmatpush1.msra.mxu0 %v143
        %156 = vmatprep.subr.mxu0 0.0
        %157 = vmatpush1.msra.mxu0 0.0
        %158 = vmatprep.subr.mxu0 0.0
        %159 = vmatpush1.msra.mxu0 0.0
        %160 = vmatprep.subr.mxu0 0.0
        %161 = vmatpush1.msra.mxu0 0.0
        %162 = vmatprep.subr.mxu0 0.0
        %163 = vmatpush1.msra.mxu0 0.0
        %164 = vmatprep.subr.mxu0 0.0
        %165 = vmatpush1.msra.mxu0 0.0
        %166 = vmatprep.subr.mxu0 0.0
        %167 = vmatpush1.msra.mxu0 0.0
        %168 = vmatprep.subr.mxu0 0.0
        %169 = vmatpush1.msra.mxu0 0.0
        %170 = vmatprep.subr.mxu0 0.0
        %171 = vmatpush1.msra.mxu0 0.0
        %172 = vmatprep.subr.mxu0 0.0
        %173 = vmatpush1.msra.mxu0 0.0
        %174 = vmatprep.subr.mxu0 0.0
        %175 = vmatpush1.msra.mxu0 0.0
        %176 = vmatprep.subr.mxu0 0.0
        %177 = vmatpush1.msra.mxu0 0.0
        %178 = vmatprep.subr.mxu0 0.0
        %179 = vmatpush1.msra.mxu0 0.0
        %180 = vmatprep.subr.mxu0 0.0
        %181 = vmatpush1.msra.mxu0 0.0
        %182 = vmatprep.subr.mxu0 0.0
        %183 = vmatpush1.msra.mxu0 0.0
        %184 = vmatprep.subr.mxu0 0.0
        %185 = vmatpush1.msra.mxu0 0.0
        %186 = vmatprep.subr.mxu0 0.0
        %187 = vmatpush1.msra.mxu0 0.0
        %188 = vmatprep.subr.mxu0 0.0
        %189 = vmatpush1.msra.mxu0 0.0
        %190 = vmatprep.subr.mxu0 0.0
        %191 = vmatpush1.msra.mxu0 0.0
        %192 = vmatprep.subr.mxu0 0.0
        %193 = vmatpush1.msra.mxu0 0.0
        %194 = vmatprep.subr.mxu0 0.0
        %195 = vmatpush1.msra.mxu0 0.0
        %196 = vmatprep.subr.mxu0 0.0
        %197 = vmatpush1.msra.mxu0 0.0
        %198 = vmatprep.subr.mxu0 0.0
        %199 = vmatpush1.msra.mxu0 0.0
        %200 = vmatprep.subr.mxu0 0.0
        %201 = vmatpush1.msra.mxu0 0.0
        %202 = vmatprep.subr.mxu0 0.0
        %203 = vmatpush1.msra.mxu0 0.0
        %204 = vmatprep.subr.mxu0 0.0
        %205 = vmatpush1.msra.mxu0 0.0
        %206 = vmatprep.subr.mxu0 0.0
        %207 = vmatpush1.msra.mxu0 0.0
        %208 = vmatprep.subr.mxu0 0.0
        %209 = vmatpush1.msra.mxu0 0.0
        %210 = vmatprep.subr.mxu0 0.0
        %211 = vmatpush1.msra.mxu0 0.0
        %212 = vmatprep.mubr.f32.mxu0 0.0
        %213 = vmatmul.mubr.f32.gmra.mrb[0].mxu0 %v146
        %v214 = vpop.f32.mrb[0].mxu0
        %v215 = vadd.f32 0.0, %v214
        %v216 = vpop.f32.mrb[0].mxu0
        %217 = vdwg.mxu0
        %218 = vst [vmem:[%s134] sm:$0xff] %v215
        %s219 = sand.u32 %s71, 1
        %s220 = scalar_lea.sflag [#allocation3], %s219
        %s221 = sand.u32 %s71, 1
        %s222 = smul.addr %s221, 8
        %s223 = scalar_lea.vmem [#allocation2], %s222
        // Predicated region
        $region29: #{tpu_custom_call.1} parent=27 // pred_check
          %p224 = pneg %p81
        $region30: #{tpu_custom_call.1} parent=27 // pred_check_branch
          %226 = sbr.rel (%p224) target = $region32
        $region31: #{tpu_custom_call.1} parent=27 // pred_region
          %s228 = ssub.s32 128, 128
          %229 = vsyncadd %s220, %s228
          %s230 = smul.addr %s16, 128
          %s231 = scalar_lea.hbm %s2, %s230
          %s233 = sshll.u32 %s223, 4
          %s234 = int_to_ptr.vmem [resolvable:$true] %s233
          %236 = dma.vmem_to_hbm [thread:$0]  %s234, 128, %s231, %s220
        $region32: #{tpu_custom_call.1} parent=27 // pred_fallthru
          _
      $region28: #{tpu_custom_call.1} parent=5 // pred_fallthru
        _
      %p237 = scmp.le.s32.totalorder 2, %s11
      // Predicated region
      $region33: #{tpu_custom_call.1} parent=5 // pred_check
        %p238 = pneg %p237
      $region34: #{tpu_custom_call.1} parent=5 // pred_check_branch
        %240 = sbr.rel (%p238) target = $region36
      $region35: #{tpu_custom_call.1} parent=5 // pred_region
        %s241 = ssub.s32 %s11, 2
        // Predicated region
        $region37: #{tpu_custom_call.1} parent=35 // pred_check
          %p242 = pneg %p87
        $region38: #{tpu_custom_call.1} parent=35 // pred_check_branch
          %244 = sbr.rel (%p242) target = $region40
        $region39: #{tpu_custom_call.1} parent=35 // pred_region
          %s245 = sand.u32 %s72, 1
          %s246 = scalar_lea.sflag [#allocation3], %s245
          %s247 = sand.u32 %s72, 1
          %s248 = smul.addr %s247, 8
          %s249 = scalar_lea.vmem [#allocation2], %s248
          %250 = dma.done %s246, 128
        $region40: #{tpu_custom_call.1} parent=35 // pred_fallthru
          _
      $region36: #{tpu_custom_call.1} parent=5 // pred_fallthru
        _
    $region6: #{tpu_custom_call.1} parent=1 // loop_footer
      %s15 = sadd.s32 1, %s11
    $region7: #{tpu_custom_call.1} parent=1 // loop_footer_branch
      %10 = sbr.rel target = $region3
    $region8: #{tpu_custom_call.1} parent=1 // loop_exit
      _
    %251 = vsyncpa [#allocation3], 1
    %s252 = scalar_lea.sflag [#allocation3], 1
    %253 = vsyncpa %s252, 1

</llo_original>
